<compile_context>
chip_gen: v6e
topology: v6e:2x2x1
jax: 0.10.0
libtpu: 0.0.40
codegen_flags: <defaults>
</compile_context>

<pallas_src>
import functools
import math

import jax
import jax.numpy as jnp
from jax import lax
from jax.experimental import pallas as pl
from jax.experimental.pallas import tpu as pltpu

_LANES = 128      # vreg lane width; keep the fast axis lane-dense
_SUBLANES = 8


def _round_up(n, m):
    return ((n + m - 1) // m) * m


def _default_num_splits():
    """2 on chips with two TensorCores (v7x), 1 on single-TC chips (v5e/v6e)."""
    # TODO(synk): switch to pltpu.get_tpu_info() once it exposes a core count.
    try:
        kind = jax.devices()[0].device_kind.lower()
    except Exception:
        return 1
    return 2 if "v7" in kind else 1


def _bce_quant_kernel(x_ref, o_ref, *, c, use_poly, block_rows, rows,
                      steps_per_split, apply_row_mask):
    """One grid step: per-element loss on a (block_rows, 128) tile, accumulated
    into this split's (8, 128) output block (VMEM-resident across the step axis)."""
    split = pl.program_id(0)
    step = pl.program_id(1)

    @pl.when(step == 0)
    def _init():
        o_ref[...] = jnp.zeros_like(o_ref)

    x = x_ref[...].astype(jnp.float32)

    # y = (sign(x)+1)/2 in {0, 0.5, 1} collapses to a single +-1 select: at
    # x == 0 both Gaussians coincide, so the y == 0.5 case gives the same value
    # either way and torch.sign() is not needed.
    s = jnp.where(x > 0.0, 1.0, -1.0)
    d_sel = x - s
    d_oth = x + s
    z_sel = c * (d_sel * d_sel)          # == log(p) of the "target" BCE term
    z_oth = c * (d_oth * d_oth)          # == log(p) of the "other" term, <= c < 0

    # BCE term 1: t * log(p); torch BCELoss clamps each log term at -100.
    log_p = jnp.maximum(z_sel, -100.0)

    # BCE term 2: (1 - t) * log(1 - p), p = exp(z_oth) <= exp(c).
    p = jnp.exp(z_oth)
    if use_poly:
        # p <= exp(c) <= 0.2 (std <= ~0.55): 6-term series for log(1-p),
        # |err| < 3e-6, keeps the EUP at a single transcendental (the exp) per
        # element.  log(1-p) >= log(0.8) here, so the -100 clamp is a no-op.
        log_1mp = -p * (1.0 + p * (0.5 + p * (1.0 / 3.0 +
                        p * (0.25 + p * (0.2 + p * (1.0 / 6.0))))))
    else:
        log_1mp = jnp.maximum(jnp.log(1.0 - p), -100.0)

    loss = -(log_p + log_1mp)            # per-element (l_a + l_b) contribution

    if apply_row_mask:
        # Only compiled for ragged grids / uneven core splits: zero out rows
        # past the end of the (rows, 128) view, including fully-overflowing
        # steps whose index_map was clamped back onto the last real block.
        start = (split * steps_per_split + step) * block_rows
        row = lax.broadcasted_iota(jnp.int32, loss.shape, 0)
        loss = jnp.where(row < rows - start, loss, 0.0)

    # Per-step accumulation into one (8,128) tile: the reshape keeps whole
    # (8,128) tiles together, so the axis-0 sum is pure VPU vreg adds.
    o_ref[...] += jnp.sum(
        loss.reshape(block_rows // _SUBLANES, _SUBLANES, _LANES), axis=0)


def bce_quantization(x, std, *, max_block_rows=8192, num_splits=None):
    """Scalar float32 loss = BCE(x_a, y) + BCE(x_b, 1 - y), mean reduction."""
    n = int(x.size)
    itemsize = jnp.dtype(x.dtype).itemsize
    sub = max(_SUBLANES, 32 // max(1, itemsize))   # 8 f32 / 16 bf16 / 32 int8 rows

    # Lane-dense view of the flattened input in its *native* dtype: no wrapper
    # astype, and no copy at all when n already fills whole (sub, 128) tiles.
    x_flat = x.reshape(-1)
    rows = _round_up(-(-n // _LANES), sub)
    pad = rows * _LANES - n
    if pad:
        # Only for sizes that don't fill whole tiles (small inputs in practice).
        # Pad elements are exactly 0.0; their constant per-element loss is
        # subtracted analytically below, so the hot loop carries no tail mask.
        x_flat = jnp.pad(x_flat, (0, pad))
    x2d = x_flat.reshape(rows, _LANES)

    block_rows = min(int(max_block_rows), rows)
    block_rows = max(sub, (block_rows // sub) * sub)   # sublane-aligned, <= rows
    steps_total = -(-rows // block_rows)

    if num_splits is None:
        num_splits = _default_num_splits()
    num_splits = max(1, min(int(num_splits), steps_total))
    steps_per_split = -(-steps_total // num_splits)
    apply_row_mask = (num_splits * steps_per_split * block_rows) != rows

    c = -0.5 / (float(std) * float(std))
    use_poly = math.exp(c) <= 0.2      # series for log(1-p) valid & accurate

    # Exact loss of one zero (pad) element: x = 0  ->  z_sel = z_oth = c.
    p0 = math.exp(c)
    pad_unit = -(max(c, -100.0) + max(math.log1p(-p0), -100.0))

    kernel = functools.partial(
        _bce_quant_kernel, c=c, use_poly=use_poly, block_rows=block_rows,
        rows=rows, steps_per_split=steps_per_split, apply_row_mask=apply_row_mask)

    def in_index(split, step):
        # Clamp so an uneven split never addresses a block past the array; the
        # clamped (duplicate) blocks are fully zeroed by the in-kernel row mask.
        return (jnp.minimum(split * steps_per_split + step, steps_total - 1), 0)

    partials = pl.pallas_call(
        kernel,
        out_shape=jax.ShapeDtypeStruct((num_splits * _SUBLANES, _LANES), jnp.float32),
        grid_spec=pltpu.PrefetchScalarGridSpec(
            num_scalar_prefetch=0,
            grid=(num_splits, steps_total if num_splits == 1 else steps_per_split)
            if False else (num_splits, steps_per_split),
            in_specs=[pl.BlockSpec((block_rows, _LANES), in_index)],
            out_specs=pl.BlockSpec((_SUBLANES, _LANES), lambda split, step: (split, 0)),
        ),
        compiler_params=pltpu.CompilerParams(
            dimension_semantics=("parallel", "arbitrary"),
            # 8 MiB double-buffered f32 input at the default tile + headroom for
            # Mosaic-materialized elementwise temporaries; raise together with
            # max_block_rows on v5e/v6e (128 MiB physical VMEM) if desired.
            vmem_limit_bytes=48 * 1024 * 1024,
        ),
    )(x2d)

    total = jnp.sum(partials) - jnp.float32(pad * pad_unit)
    return total / jnp.float32(n)


def _reference(x, std):
    x = x.astype(jnp.float32)
    x_a = jnp.exp(-0.5 * ((x - 1.0) / std) ** 2)
    x_b = jnp.exp(-0.5 * ((x + 1.0) / std) ** 2)
    y = (jnp.sign(x) + 1.0) / 2.0

    def bce(p, t):
        log_p = jnp.maximum(jnp.log(p), -100.0)
        log_1mp = jnp.maximum(jnp.log(1.0 - p), -100.0)
        return jnp.mean(-(t * log_p + (1.0 - t) * log_1mp))

    return bce(x_a, y) + bce(x_b, 1.0 - y)


if __name__ == "__main__":
    std = 0.5  # module hyperparameter (Loss uses BCEQuantization(0.5))
    key = jax.random.PRNGKey(0)
    k1, k2, k3 = jax.random.split(key, 3)

    # HashNet-style hash logits u: (batch, bit). n fills whole tiles -> the
    # zero-copy, mask-free fast path.
    x = jax.random.normal(k1, (256, 64), dtype=jnp.float32)
    loss = jax.block_until_ready(bce_quantization(x, std))
    ref = _reference(x, std)
    assert jnp.allclose(loss, ref, rtol=1e-5, atol=1e-5), (loss, ref)

    # Non-multiple-of-128 size: exercises the analytic zero-pad correction and a
    # multi-step grid.
    x2 = jax.random.normal(k2, (40, 51), dtype=jnp.float32)
    loss2 = jax.block_until_ready(bce_quantization(x2, std, max_block_rows=8))
    ref2 = _reference(x2, std)
    assert jnp.allclose(loss2, ref2, rtol=1e-5, atol=1e-5), (loss2, ref2)

    # Forced 2-way split with an uneven step count: exercises the clamped
    # index_map, overflow-step row mask and per-split output accumulators.
    # (Correct on single-TensorCore chips too; the split just serializes.)
    x3 = jax.random.normal(k3, (96, 32), dtype=jnp.float32)
    loss3 = jax.block_until_ready(
        bce_quantization(x3, std, max_block_rows=8, num_splits=2))
    ref3 = _reference(x3, std)
    assert jnp.allclose(loss3, ref3, rtol=1e-5, atol=1e-5), (loss3, ref3)

    print("KERNEL_OK")
</pallas_src>

<mosaic_0001>
module attributes {stable_mosaic.version = 11 : i64} {
  func.func @_bce_quant_kernel(%arg0: i32, %arg1: i32, %arg2: memref<128x128xf32, #tpu.memory_space<vmem>>, %arg3: memref<8x128xf32, #tpu.memory_space<vmem>>) attributes {dimension_semantics = [#tpu.dimension_semantics<parallel>, #tpu.dimension_semantics<arbitrary>], iteration_bounds = array<i64: 1, 1>, scalar_prefetch = 0 : i64, scratch_operands = 0 : i64, tpu.core_type = #tpu.core_type<tc>, window_params = [{transform_indices = @transform_0, window_bounds = array<i64: 128, 128>}, {transform_indices = @transform_1, window_bounds = array<i64: 8, 128>}]} {
    %c0_i32 = arith.constant 0 : i32
    %0 = arith.cmpi eq, %arg1, %c0_i32 : i32
    %1 = arith.extui %0 : i1 to i32
    %c0_i32_0 = arith.constant 0 : i32
    %2 = arith.cmpi ne, %1, %c0_i32_0 : i32
    scf.if %2 {
      %cst_20 = arith.constant 0.000000e+00 : f32
      %47 = vector.broadcast %cst_20 : f32 to vector<8x128xf32>
      %c0_21 = arith.constant 0 : index
      %c0_22 = arith.constant 0 : index
      %48 = vector.load %arg3[%c0_21, %c0_22] : memref<8x128xf32, #tpu.memory_space<vmem>>, vector<8x128xf32>
      tpu.vector_store %arg3[%c0_21, %c0_22], %47 {strides = array<i32>} : memref<8x128xf32, #tpu.memory_space<vmem>>, vector<8x128xf32>,
    } else {
    }
    %c0 = arith.constant 0 : index
    %c0_1 = arith.constant 0 : index
    %3 = vector.load %arg2[%c0, %c0_1] : memref<128x128xf32, #tpu.memory_space<vmem>>, vector<128x128xf32>
    %cst = arith.constant 0.000000e+00 : f32
    %4 = vector.broadcast %cst : f32 to vector<128x128xf32>
    %5 = arith.cmpf ogt, %3, %4 : vector<128x128xf32>
    %cst_2 = arith.constant 1.000000e+00 : f32
    %cst_3 = arith.constant -1.000000e+00 : f32
    %6 = vector.broadcast %cst_2 : f32 to vector<128x128xf32>
    %7 = vector.broadcast %cst_3 : f32 to vector<128x128xf32>
    %8 = arith.select %5, %6, %7 : vector<128x128xi1>, vector<128x128xf32>
    %9 = arith.subf %3, %8 : vector<128x128xf32>
    %10 = arith.addf %3, %8 : vector<128x128xf32>
    %11 = arith.mulf %9, %9 : vector<128x128xf32>
    %cst_4 = arith.constant -2.000000e+00 : f32
    %12 = vector.broadcast %cst_4 : f32 to vector<128x128xf32>
    %13 = arith.mulf %12, %11 : vector<128x128xf32>
    %14 = arith.mulf %10, %10 : vector<128x128xf32>
    %cst_5 = arith.constant -2.000000e+00 : f32
    %15 = vector.broadcast %cst_5 : f32 to vector<128x128xf32>
    %16 = arith.mulf %15, %14 : vector<128x128xf32>
    %cst_6 = arith.constant -1.000000e+02 : f32
    %17 = vector.broadcast %cst_6 : f32 to vector<128x128xf32>
    %18 = arith.maximumf %13, %17 : vector<128x128xf32>
    %19 = math.exp %16 : vector<128x128xf32>
    %cst_7 = arith.constant 0.000000e+00 : f32
    %20 = vector.broadcast %cst_7 : f32 to vector<128x128xf32>
    %21 = arith.subf %20, %19 : vector<128x128xf32>
    %cst_8 = arith.constant 0.166666672 : f32
    %22 = vector.broadcast %cst_8 : f32 to vector<128x128xf32>
    %23 = arith.mulf %19, %22 : vector<128x128xf32>
    %cst_9 = arith.constant 2.000000e-01 : f32
    %24 = vector.broadcast %cst_9 : f32 to vector<128x128xf32>
    %25 = arith.addf %24, %23 : vector<128x128xf32>
    %26 = arith.mulf %19, %25 : vector<128x128xf32>
    %cst_10 = arith.constant 2.500000e-01 : f32
    %27 = vector.broadcast %cst_10 : f32 to vector<128x128xf32>
    %28 = arith.addf %27, %26 : vector<128x128xf32>
    %29 = arith.mulf %19, %28 : vector<128x128xf32>
    %cst_11 = arith.constant 0.333333343 : f32
    %30 = vector.broadcast %cst_11 : f32 to vector<128x128xf32>
    %31 = arith.addf %30, %29 : vector<128x128xf32>
    %32 = arith.mulf %19, %31 : vector<128x128xf32>
    %cst_12 = arith.constant 5.000000e-01 : f32
    %33 = vector.broadcast %cst_12 : f32 to vector<128x128xf32>
    %34 = arith.addf %33, %32 : vector<128x128xf32>
    %35 = arith.mulf %19, %34 : vector<128x128xf32>
    %cst_13 = arith.constant 1.000000e+00 : f32
    %36 = vector.broadcast %cst_13 : f32 to vector<128x128xf32>
    %37 = arith.addf %36, %35 : vector<128x128xf32>
    %38 = arith.mulf %21, %37 : vector<128x128xf32>
    %39 = arith.addf %18, %38 : vector<128x128xf32>
    %cst_14 = arith.constant 0.000000e+00 : f32
    %40 = vector.broadcast %cst_14 : f32 to vector<128x128xf32>
    %41 = arith.subf %40, %39 : vector<128x128xf32>
    %c0_15 = arith.constant 0 : index
    %c0_16 = arith.constant 0 : index
    %42 = vector.load %arg3[%c0_15, %c0_16] : memref<8x128xf32, #tpu.memory_space<vmem>>, vector<8x128xf32>
    %43 = vector.shape_cast %41 : vector<128x128xf32> to vector<16x8x128xf32>
    %cst_17 = arith.constant dense<0.000000e+00> : vector<8x128xf32>
    %44 = vector.multi_reduction <add>, %43, %cst_17 [0] : vector<16x8x128xf32> to vector<8x128xf32>
    %45 = arith.addf %42, %44 : vector<8x128xf32>
    %c0_18 = arith.constant 0 : index
    %c0_19 = arith.constant 0 : index
    %46 = vector.load %arg3[%c0_18, %c0_19] : memref<8x128xf32, #tpu.memory_space<vmem>>, vector<8x128xf32>
    tpu.vector_store %arg3[%c0_18, %c0_19], %45 {strides = array<i32>} : memref<8x128xf32, #tpu.memory_space<vmem>>, vector<8x128xf32>,
    return
  }
  func.func @transform_0(%arg0: i32, %arg1: i32) -> (i32, i32) {
    %c1_i32 = arith.constant 1 : i32
    %0 = arith.muli %arg0, %c1_i32 : i32
    %1 = arith.addi %0, %arg1 : i32
    %c0_i32 = arith.constant 0 : i32
    %2 = arith.minsi %1, %c0_i32 : i32
    %c0_i32_0 = arith.constant 0 : i32
    %c0_i32_1 = arith.constant 0 : i32
    return %2, %c0_i32_0 : i32, i32
  }
  func.func @transform_1(%arg0: i32, %arg1: i32) -> (i32, i32) {
    %c0_i32 = arith.constant 0 : i32
    %c0_i32_0 = arith.constant 0 : i32
    return %arg0, %c0_i32 : i32, i32
  }
}

</mosaic_0001>

<llo_original>
// kernel: tpu_custom_call.1
$region0: #{tpu_custom_call.1}
  #allocation0 [shape = 'u32[]', space=smem, size = 0x4, offset = 0x4, fixed_abs, tag = 'smem constant byte address 0x4 - core index']
  #allocation1 [shape = 'u32[144,128]{1,0:T(1,128)}', space=vmem, size = 0x12000, scoped, tag = 'internal scratch']
  %s0 = inlined_call_operand.hbm [shape: f32[128,128], index: 0, kind: input, shape index: {}]
  %s1 = inlined_call_operand.hbm [shape: f32[8,128], index: 1, kind: output, shape index: {}]
  %s2 = sld [smem:[#allocation0]]
  $region22: #{tpu_custom_call.1} parent=0
    _
  %s4 = ssub.s32 1, %s2
  %s5 = scalar_select 0, %s4, %s2
  $region1: #{tpu_custom_call.1} parent=0
    #allocation2 [shape = 'u8[65536]{0}', space=vmem, size = 0x10000, scoped, tag = 'input window, operand 0, single buffered']
    #allocation3 [shape = 's32[1]{0}', space=sflag, size = 0x4, scoped, tag = 'scoped memory for tpu_custom_call.1']
    #allocation4 [shape = 's32[1]{0}', space=sflag, size = 0x4, scoped, tag = 'scoped memory for tpu_custom_call.1']
    #allocation5 [shape = 'u8[4096]{0}', space=vmem, size = 0x1000, scoped, tag = 'output window, operand 0, single buffered']
    %6 = vsyncpa [#allocation3], 0
    %7 = vsyncpa [#allocation4], 0
    // Predicated region
    $region2: #{tpu_custom_call.1} parent=1 // pred_check
      _
    $region3: #{tpu_custom_call.1} parent=1 // pred_check_branch
      %9 = sbr.rel (0) target = $region5
    $region4: #{tpu_custom_call.1} parent=1 // pred_region
      %s10 = sadd.s32 0, 0
      %p11 = scmp.lt.s32.totalorder %s10, 0
      %s12 = scalar_select %p11, %s10, 0
      %s13 = smul.u32 16, %s12
      %s15 = ssub.s32 2048, 2048
      %16 = vsyncadd [#allocation3], %s15
      %s17 = smul.addr %s13, 128
      %s18 = scalar_lea.hbm %s0, %s17
      %s19 = sshll.u32 [#allocation2], 4
      %s20 = int_to_ptr.vmem [resolvable:$true] %s19
      %25 = dma.hbm_to_vmem [thread:$0]  %s18, 2048, %s20, [#allocation3], 128, 128, 8
    $region5: #{tpu_custom_call.1} parent=1 // pred_fallthru
      _
    // Predicated region
    $region6: #{tpu_custom_call.1} parent=1 // pred_check
      _
    $region7: #{tpu_custom_call.1} parent=1 // pred_check_branch
      %27 = sbr.rel (0) target = $region9
    $region8: #{tpu_custom_call.1} parent=1 // pred_region
      %28 = dma.done [#allocation3], 2048
    $region9: #{tpu_custom_call.1} parent=1 // pred_fallthru
      _
    %s29 = sadd.s32 0, 0
    %p30 = scmp.lt.s32.totalorder %s29, 0
    %s31 = scalar_select %p30, %s29, 0
    %s32 = smul.u32 16, %s31
    %p33 = scmp.eq.s32.totalorder 0, 0
    // Predicated region
    $region10: #{tpu_custom_call.1} parent=1 // pred_check
      %p34 = pneg %p33
    $region11: #{tpu_custom_call.1} parent=1 // pred_check_branch
      %36 = sbr.rel (%p34) target = $region13
    $region12: #{tpu_custom_call.1} parent=1 // pred_region
      %37 = vst [vmem:[#allocation5] sm:$0xff] 0.0
    $region13: #{tpu_custom_call.1} parent=1 // pred_fallthru
      _
    %v38 = vld [vmem:[#allocation2] sm:$0xff]
    %v39 = vld [vmem:[#allocation2 + $0x8] sm:$0xff]
    %v40 = vld [vmem:[#allocation2 + $0x10] sm:$0xff]
    %v41 = vld [vmem:[#allocation2 + $0x18] sm:$0xff]
    %v42 = vld [vmem:[#allocation2 + $0x20] sm:$0xff]
    %v43 = vld [vmem:[#allocation2 + $0x28] sm:$0xff]
    %v44 = vld [vmem:[#allocation2 + $0x30] sm:$0xff]
    %v45 = vld [vmem:[#allocation2 + $0x38] sm:$0xff]
    %v46 = vld [vmem:[#allocation2 + $0x40] sm:$0xff]
    %v47 = vld [vmem:[#allocation2 + $0x48] sm:$0xff]
    %v48 = vld [vmem:[#allocation2 + $0x50] sm:$0xff]
    %v49 = vld [vmem:[#allocation2 + $0x58] sm:$0xff]
    %v50 = vld [vmem:[#allocation2 + $0x60] sm:$0xff]
    %v51 = vld [vmem:[#allocation2 + $0x68] sm:$0xff]
    %v52 = vld [vmem:[#allocation2 + $0x70] sm:$0xff]
    %v53 = vld [vmem:[#allocation2 + $0x78] sm:$0xff]
    %vm54 = vcmp.gt.f32.partialorder %v38, 0.0
    %vm55 = vcmp.gt.f32.partialorder %v39, 0.0
    %vm56 = vcmp.gt.f32.partialorder %v40, 0.0
    %vm57 = vcmp.gt.f32.partialorder %v41, 0.0
    %vm58 = vcmp.gt.f32.partialorder %v42, 0.0
    %vm59 = vcmp.gt.f32.partialorder %v43, 0.0
    %vm60 = vcmp.gt.f32.partialorder %v44, 0.0
    %vm61 = vcmp.gt.f32.partialorder %v45, 0.0
    %vm62 = vcmp.gt.f32.partialorder %v46, 0.0
    %vm63 = vcmp.gt.f32.partialorder %v47, 0.0
    %vm64 = vcmp.gt.f32.partialorder %v48, 0.0
    %vm65 = vcmp.gt.f32.partialorder %v49, 0.0
    %vm66 = vcmp.gt.f32.partialorder %v50, 0.0
    %vm67 = vcmp.gt.f32.partialorder %v51, 0.0
    %vm68 = vcmp.gt.f32.partialorder %v52, 0.0
    %vm69 = vcmp.gt.f32.partialorder %v53, 0.0
    %v70 = vsel %vm54, 1.0, -1.0
    %v71 = vsel %vm55, 1.0, -1.0
    %v72 = vsel %vm56, 1.0, -1.0
    %v73 = vsel %vm57, 1.0, -1.0
    %v74 = vsel %vm58, 1.0, -1.0
    %v75 = vsel %vm59, 1.0, -1.0
    %v76 = vsel %vm60, 1.0, -1.0
    %v77 = vsel %vm61, 1.0, -1.0
    %v78 = vsel %vm62, 1.0, -1.0
    %v79 = vsel %vm63, 1.0, -1.0
    %v80 = vsel %vm64, 1.0, -1.0
    %v81 = vsel %vm65, 1.0, -1.0
    %v82 = vsel %vm66, 1.0, -1.0
    %v83 = vsel %vm67, 1.0, -1.0
    %v84 = vsel %vm68, 1.0, -1.0
    %v85 = vsel %vm69, 1.0, -1.0
    %v86 = vsub.f32 %v38, %v70
    %v87 = vsub.f32 %v39, %v71
    %v88 = vsub.f32 %v40, %v72
    %v89 = vsub.f32 %v41, %v73
    %v90 = vsub.f32 %v42, %v74
    %v91 = vsub.f32 %v43, %v75
    %v92 = vsub.f32 %v44, %v76
    %v93 = vsub.f32 %v45, %v77
    %v94 = vsub.f32 %v46, %v78
    %v95 = vsub.f32 %v47, %v79
    %v96 = vsub.f32 %v48, %v80
    %v97 = vsub.f32 %v49, %v81
    %v98 = vsub.f32 %v50, %v82
    %v99 = vsub.f32 %v51, %v83
    %v100 = vsub.f32 %v52, %v84
    %v101 = vsub.f32 %v53, %v85
    %v102 = vadd.f32 %v38, %v70
    %v103 = vadd.f32 %v39, %v71
    %v104 = vadd.f32 %v40, %v72
    %v105 = vadd.f32 %v41, %v73
    %v106 = vadd.f32 %v42, %v74
    %v107 = vadd.f32 %v43, %v75
    %v108 = vadd.f32 %v44, %v76
    %v109 = vadd.f32 %v45, %v77
    %v110 = vadd.f32 %v46, %v78
    %v111 = vadd.f32 %v47, %v79
    %v112 = vadd.f32 %v48, %v80
    %v113 = vadd.f32 %v49, %v81
    %v114 = vadd.f32 %v50, %v82
    %v115 = vadd.f32 %v51, %v83
    %v116 = vadd.f32 %v52, %v84
    %v117 = vadd.f32 %v53, %v85
    %v118 = vmul.f32 %v86, %v86
    %v119 = vmul.f32 %v87, %v87
    %v120 = vmul.f32 %v88, %v88
    %v121 = vmul.f32 %v89, %v89
    %v122 = vmul.f32 %v90, %v90
    %v123 = vmul.f32 %v91, %v91
    %v124 = vmul.f32 %v92, %v92
    %v125 = vmul.f32 %v93, %v93
    %v126 = vmul.f32 %v94, %v94
    %v127 = vmul.f32 %v95, %v95
    %v128 = vmul.f32 %v96, %v96
    %v129 = vmul.f32 %v97, %v97
    %v130 = vmul.f32 %v98, %v98
    %v131 = vmul.f32 %v99, %v99
    %v132 = vmul.f32 %v100, %v100
    %v133 = vmul.f32 %v101, %v101
    %v134 = vmul.f32 %v118, -2.0
    %v135 = vmul.f32 %v119, -2.0
    %v136 = vmul.f32 %v120, -2.0
    %v137 = vmul.f32 %v121, -2.0
    %v138 = vmul.f32 %v122, -2.0
    %v139 = vmul.f32 %v123, -2.0
    %v140 = vmul.f32 %v124, -2.0
    %v141 = vmul.f32 %v125, -2.0
    %v142 = vmul.f32 %v126, -2.0
    %v143 = vmul.f32 %v127, -2.0
    %v144 = vmul.f32 %v128, -2.0
    %v145 = vmul.f32 %v129, -2.0
    %v146 = vmul.f32 %v130, -2.0
    %v147 = vmul.f32 %v131, -2.0
    %v148 = vmul.f32 %v132, -2.0
    %v149 = vmul.f32 %v133, -2.0
    %v150 = vmul.f32 %v102, %v102
    %v151 = vmul.f32 %v103, %v103
    %v152 = vmul.f32 %v104, %v104
    %v153 = vmul.f32 %v105, %v105
    %v154 = vmul.f32 %v106, %v106
    %v155 = vmul.f32 %v107, %v107
    %v156 = vmul.f32 %v108, %v108
    %v157 = vmul.f32 %v109, %v109
    %v158 = vmul.f32 %v110, %v110
    %v159 = vmul.f32 %v111, %v111
    %v160 = vmul.f32 %v112, %v112
    %v161 = vmul.f32 %v113, %v113
    %v162 = vmul.f32 %v114, %v114
    %v163 = vmul.f32 %v115, %v115
    %v164 = vmul.f32 %v116, %v116
    %v165 = vmul.f32 %v117, %v117
    %v166 = vmul.f32 %v150, -2.0
    %v167 = vmul.f32 %v151, -2.0
    %v168 = vmul.f32 %v152, -2.0
    %v169 = vmul.f32 %v153, -2.0
    %v170 = vmul.f32 %v154, -2.0
    %v171 = vmul.f32 %v155, -2.0
    %v172 = vmul.f32 %v156, -2.0
    %v173 = vmul.f32 %v157, -2.0
    %v174 = vmul.f32 %v158, -2.0
    %v175 = vmul.f32 %v159, -2.0
    %v176 = vmul.f32 %v160, -2.0
    %v177 = vmul.f32 %v161, -2.0
    %v178 = vmul.f32 %v162, -2.0
    %v179 = vmul.f32 %v163, -2.0
    %v180 = vmul.f32 %v164, -2.0
    %v181 = vmul.f32 %v165, -2.0
    %v182 = vmax.f32 %v134, -100.0
    %v183 = vmax.f32 %v135, -100.0
    %v184 = vmax.f32 %v136, -100.0
    %v185 = vmax.f32 %v137, -100.0
    %v186 = vmax.f32 %v138, -100.0
    %v187 = vmax.f32 %v139, -100.0
    %v188 = vmax.f32 %v140, -100.0
    %v189 = vmax.f32 %v141, -100.0
    %v190 = vmax.f32 %v142, -100.0
    %v191 = vmax.f32 %v143, -100.0
    %v192 = vmax.f32 %v144, -100.0
    %v193 = vmax.f32 %v145, -100.0
    %v194 = vmax.f32 %v146, -100.0
    %v195 = vmax.f32 %v147, -100.0
    %v196 = vmax.f32 %v148, -100.0
    %v197 = vmax.f32 %v149, -100.0
    %v198 = vmul.f32 %v166, 1.442695
    %v199 = vpow.pop %v198
    %v200 = vmul.f32 %v167, 1.442695
    %v201 = vpow.pop %v200
    %v202 = vmul.f32 %v168, 1.442695
    %v203 = vpow.pop %v202
    %v204 = vmul.f32 %v169, 1.442695
    %v205 = vpow.pop %v204
    %v206 = vmul.f32 %v170, 1.442695
    %v207 = vpow.pop %v206
    %v208 = vmul.f32 %v171, 1.442695
    %v209 = vpow.pop %v208
    %v210 = vmul.f32 %v172, 1.442695
    %v211 = vpow.pop %v210
    %v212 = vmul.f32 %v173, 1.442695
    %v213 = vpow.pop %v212
    %v214 = vmul.f32 %v174, 1.442695
    %v215 = vpow.pop %v214
    %v216 = vmul.f32 %v175, 1.442695
    %v217 = vpow.pop %v216
    %v218 = vmul.f32 %v176, 1.442695
    %v219 = vpow.pop %v218
    %v220 = vmul.f32 %v177, 1.442695
    %v221 = vpow.pop %v220
    %v222 = vmul.f32 %v178, 1.442695
    %v223 = vpow.pop %v222
    %v224 = vmul.f32 %v179, 1.442695
    %v225 = vpow.pop %v224
    %v226 = vmul.f32 %v180, 1.442695
    %v227 = vpow.pop %v226
    %v228 = vmul.f32 %v181, 1.442695
    %v229 = vpow.pop %v228
    %v230 = vsub.f32 0.0, %v199
    %v231 = vsub.f32 0.0, %v201
    %v232 = vsub.f32 0.0, %v203
    %v233 = vsub.f32 0.0, %v205
    %v234 = vsub.f32 0.0, %v207
    %v235 = vsub.f32 0.0, %v209
    %v236 = vsub.f32 0.0, %v211
    %v237 = vsub.f32 0.0, %v213
    %v238 = vsub.f32 0.0, %v215
    %v239 = vsub.f32 0.0, %v217
    %v240 = vsub.f32 0.0, %v219
    %v241 = vsub.f32 0.0, %v221
    %v242 = vsub.f32 0.0, %v223
    %v243 = vsub.f32 0.0, %v225
    %v244 = vsub.f32 0.0, %v227
    %v245 = vsub.f32 0.0, %v229
    %v246 = vmul.f32 %v199, 0.16666667
    %v247 = vmul.f32 %v201, 0.16666667
    %v248 = vmul.f32 %v203, 0.16666667
    %v249 = vmul.f32 %v205, 0.16666667
    %v250 = vmul.f32 %v207, 0.16666667
    %v251 = vmul.f32 %v209, 0.16666667
    %v252 = vmul.f32 %v211, 0.16666667
    %v253 = vmul.f32 %v213, 0.16666667
    %v254 = vmul.f32 %v215, 0.16666667
    %v255 = vmul.f32 %v217, 0.16666667
    %v256 = vmul.f32 %v219, 0.16666667
    %v257 = vmul.f32 %v221, 0.16666667
    %v258 = vmul.f32 %v223, 0.16666667
    %v259 = vmul.f32 %v225, 0.16666667
    %v260 = vmul.f32 %v227, 0.16666667
    %v261 = vmul.f32 %v229, 0.16666667
    %v262 = vadd.f32 %v246, 0.2
    %v263 = vadd.f32 %v247, 0.2
    %v264 = vadd.f32 %v248, 0.2
    %v265 = vadd.f32 %v249, 0.2
    %v266 = vadd.f32 %v250, 0.2
    %v267 = vadd.f32 %v251, 0.2
    %v268 = vadd.f32 %v252, 0.2
    %v269 = vadd.f32 %v253, 0.2
    %v270 = vadd.f32 %v254, 0.2
    %v271 = vadd.f32 %v255, 0.2
    %v272 = vadd.f32 %v256, 0.2
    %v273 = vadd.f32 %v257, 0.2
    %v274 = vadd.f32 %v258, 0.2
    %v275 = vadd.f32 %v259, 0.2
    %v276 = vadd.f32 %v260, 0.2
    %v277 = vadd.f32 %v261, 0.2
    %v278 = vmul.f32 %v199, %v262
    %v279 = vmul.f32 %v201, %v263
    %v280 = vmul.f32 %v203, %v264
    %v281 = vmul.f32 %v205, %v265
    %v282 = vmul.f32 %v207, %v266
    %v283 = vmul.f32 %v209, %v267
    %v284 = vmul.f32 %v211, %v268
    %v285 = vmul.f32 %v213, %v269
    %v286 = vmul.f32 %v215, %v270
    %v287 = vmul.f32 %v217, %v271
    %v288 = vmul.f32 %v219, %v272
    %v289 = vmul.f32 %v221, %v273
    %v290 = vmul.f32 %v223, %v274
    %v291 = vmul.f32 %v225, %v275
    %v292 = vmul.f32 %v227, %v276
    %v293 = vmul.f32 %v229, %v277
    %v294 = vadd.f32 %v278, 0.25
    %v295 = vadd.f32 %v279, 0.25
    %v296 = vadd.f32 %v280, 0.25
    %v297 = vadd.f32 %v281, 0.25
    %v298 = vadd.f32 %v282, 0.25
    %v299 = vadd.f32 %v283, 0.25
    %v300 = vadd.f32 %v284, 0.25
    %v301 = vadd.f32 %v285, 0.25
    %v302 = vadd.f32 %v286, 0.25
    %v303 = vadd.f32 %v287, 0.25
    %v304 = vadd.f32 %v288, 0.25
    %v305 = vadd.f32 %v289, 0.25
    %v306 = vadd.f32 %v290, 0.25
    %v307 = vadd.f32 %v291, 0.25
    %v308 = vadd.f32 %v292, 0.25
    %v309 = vadd.f32 %v293, 0.25
    %v310 = vmul.f32 %v199, %v294
    %v311 = vmul.f32 %v201, %v295
    %v312 = vmul.f32 %v203, %v296
    %v313 = vmul.f32 %v205, %v297
    %v314 = vmul.f32 %v207, %v298
    %v315 = vmul.f32 %v209, %v299
    %v316 = vmul.f32 %v211, %v300
    %v317 = vmul.f32 %v213, %v301
    %v318 = vmul.f32 %v215, %v302
    %v319 = vmul.f32 %v217, %v303
    %v320 = vmul.f32 %v219, %v304
    %v321 = vmul.f32 %v221, %v305
    %v322 = vmul.f32 %v223, %v306
    %v323 = vmul.f32 %v225, %v307
    %v324 = vmul.f32 %v227, %v308
    %v325 = vmul.f32 %v229, %v309
    %v326 = vadd.f32 %v310, 0.33333334
    %v327 = vadd.f32 %v311, 0.33333334
    %v328 = vadd.f32 %v312, 0.33333334
    %v329 = vadd.f32 %v313, 0.33333334
    %v330 = vadd.f32 %v314, 0.33333334
    %v331 = vadd.f32 %v315, 0.33333334
    %v332 = vadd.f32 %v316, 0.33333334
    %v333 = vadd.f32 %v317, 0.33333334
    %v334 = vadd.f32 %v318, 0.33333334
    %v335 = vadd.f32 %v319, 0.33333334
    %v336 = vadd.f32 %v320, 0.33333334
    %v337 = vadd.f32 %v321, 0.33333334
    %v338 = vadd.f32 %v322, 0.33333334
    %v339 = vadd.f32 %v323, 0.33333334
    %v340 = vadd.f32 %v324, 0.33333334
    %v341 = vadd.f32 %v325, 0.33333334
    %v342 = vmul.f32 %v199, %v326
    %v343 = vmul.f32 %v201, %v327
    %v344 = vmul.f32 %v203, %v328
    %v345 = vmul.f32 %v205, %v329
    %v346 = vmul.f32 %v207, %v330
    %v347 = vmul.f32 %v209, %v331
    %v348 = vmul.f32 %v211, %v332
    %v349 = vmul.f32 %v213, %v333
    %v350 = vmul.f32 %v215, %v334
    %v351 = vmul.f32 %v217, %v335
    %v352 = vmul.f32 %v219, %v336
    %v353 = vmul.f32 %v221, %v337
    %v354 = vmul.f32 %v223, %v338
    %v355 = vmul.f32 %v225, %v339
    %v356 = vmul.f32 %v227, %v340
    %v357 = vmul.f32 %v229, %v341
    %v358 = vadd.f32 %v342, 0.5
    %v359 = vadd.f32 %v343, 0.5
    %v360 = vadd.f32 %v344, 0.5
    %v361 = vadd.f32 %v345, 0.5
    %v362 = vadd.f32 %v346, 0.5
    %v363 = vadd.f32 %v347, 0.5
    %v364 = vadd.f32 %v348, 0.5
    %v365 = vadd.f32 %v349, 0.5
    %v366 = vadd.f32 %v350, 0.5
    %v367 = vadd.f32 %v351, 0.5
    %v368 = vadd.f32 %v352, 0.5
    %v369 = vadd.f32 %v353, 0.5
    %v370 = vadd.f32 %v354, 0.5
    %v371 = vadd.f32 %v355, 0.5
    %v372 = vadd.f32 %v356, 0.5
    %v373 = vadd.f32 %v357, 0.5
    %v374 = vmul.f32 %v199, %v358
    %v375 = vmul.f32 %v201, %v359
    %v376 = vmul.f32 %v203, %v360
    %v377 = vmul.f32 %v205, %v361
    %v378 = vmul.f32 %v207, %v362
    %v379 = vmul.f32 %v209, %v363
    %v380 = vmul.f32 %v211, %v364
    %v381 = vmul.f32 %v213, %v365
    %v382 = vmul.f32 %v215, %v366
    %v383 = vmul.f32 %v217, %v367
    %v384 = vmul.f32 %v219, %v368
    %v385 = vmul.f32 %v221, %v369
    %v386 = vmul.f32 %v223, %v370
    %v387 = vmul.f32 %v225, %v371
    %v388 = vmul.f32 %v227, %v372
    %v389 = vmul.f32 %v229, %v373
    %v390 = vadd.f32 %v374, 1.0
    %v391 = vadd.f32 %v375, 1.0
    %v392 = vadd.f32 %v376, 1.0
    %v393 = vadd.f32 %v377, 1.0
    %v394 = vadd.f32 %v378, 1.0
    %v395 = vadd.f32 %v379, 1.0
    %v396 = vadd.f32 %v380, 1.0
    %v397 = vadd.f32 %v381, 1.0
    %v398 = vadd.f32 %v382, 1.0
    %v399 = vadd.f32 %v383, 1.0
    %v400 = vadd.f32 %v384, 1.0
    %v401 = vadd.f32 %v385, 1.0
    %v402 = vadd.f32 %v386, 1.0
    %v403 = vadd.f32 %v387, 1.0
    %v404 = vadd.f32 %v388, 1.0
    %v405 = vadd.f32 %v389, 1.0
    %v406 = vmul.f32 %v230, %v390
    %v407 = vmul.f32 %v231, %v391
    %v408 = vmul.f32 %v232, %v392
    %v409 = vmul.f32 %v233, %v393
    %v410 = vmul.f32 %v234, %v394
    %v411 = vmul.f32 %v235, %v395
    %v412 = vmul.f32 %v236, %v396
    %v413 = vmul.f32 %v237, %v397
    %v414 = vmul.f32 %v238, %v398
    %v415 = vmul.f32 %v239, %v399
    %v416 = vmul.f32 %v240, %v400
    %v417 = vmul.f32 %v241, %v401
    %v418 = vmul.f32 %v242, %v402
    %v419 = vmul.f32 %v243, %v403
    %v420 = vmul.f32 %v244, %v404
    %v421 = vmul.f32 %v245, %v405
    %v422 = vadd.f32 %v182, %v406
    %v423 = vadd.f32 %v183, %v407
    %v424 = vadd.f32 %v184, %v408
    %v425 = vadd.f32 %v185, %v409
    %v426 = vadd.f32 %v186, %v410
    %v427 = vadd.f32 %v187, %v411
    %v428 = vadd.f32 %v188, %v412
    %v429 = vadd.f32 %v189, %v413
    %v430 = vadd.f32 %v190, %v414
    %v431 = vadd.f32 %v191, %v415
    %v432 = vadd.f32 %v192, %v416
    %v433 = vadd.f32 %v193, %v417
    %v434 = vadd.f32 %v194, %v418
    %v435 = vadd.f32 %v195, %v419
    %v436 = vadd.f32 %v196, %v420
    %v437 = vadd.f32 %v197, %v421
    %v438 = vsub.f32 0.0, %v422
    %v439 = vsub.f32 0.0, %v423
    %v440 = vsub.f32 0.0, %v424
    %v441 = vsub.f32 0.0, %v425
    %v442 = vsub.f32 0.0, %v426
    %v443 = vsub.f32 0.0, %v427
    %v444 = vsub.f32 0.0, %v428
    %v445 = vsub.f32 0.0, %v429
    %v446 = vsub.f32 0.0, %v430
    %v447 = vsub.f32 0.0, %v431
    %v448 = vsub.f32 0.0, %v432
    %v449 = vsub.f32 0.0, %v433
    %v450 = vsub.f32 0.0, %v434
    %v451 = vsub.f32 0.0, %v435
    %v452 = vsub.f32 0.0, %v436
    %v453 = vsub.f32 0.0, %v437
    %v454 = vld [vmem:[#allocation5] sm:$0xff]
    %v455 = vadd.f32 %v438, %v439
    %v456 = vadd.f32 %v455, %v440
    %v457 = vadd.f32 %v456, %v441
    %v458 = vadd.f32 %v457, %v442
    %v459 = vadd.f32 %v458, %v443
    %v460 = vadd.f32 %v459, %v444
    %v461 = vadd.f32 %v460, %v445
    %v462 = vadd.f32 %v461, %v446
    %v463 = vadd.f32 %v462, %v447
    %v464 = vadd.f32 %v463, %v448
    %v465 = vadd.f32 %v464, %v449
    %v466 = vadd.f32 %v465, %v450
    %v467 = vadd.f32 %v466, %v451
    %v468 = vadd.f32 %v467, %v452
    %v469 = vadd.f32 %v468, %v453
    %v470 = vadd.f32 %v454, %v469
    %471 = vst [vmem:[#allocation5] sm:$0xff] %v470
    // Predicated region
    $region14: #{tpu_custom_call.1} parent=1 // pred_check
      _
    $region15: #{tpu_custom_call.1} parent=1 // pred_check_branch
      %473 = sbr.rel (0) target = $region17
    $region16: #{tpu_custom_call.1} parent=1 // pred_region
      %s475 = ssub.s32 128, 128
      %476 = vsyncadd [#allocation4], %s475
      %s478 = sshll.u32 [#allocation5], 4
      %s479 = int_to_ptr.vmem [resolvable:$true] %s478
      %481 = dma.vmem_to_hbm [thread:$0]  %s479, 128, %s1, [#allocation4]
    $region17: #{tpu_custom_call.1} parent=1 // pred_fallthru
      _
    // Predicated region
    $region18: #{tpu_custom_call.1} parent=1 // pred_check
      _
    $region19: #{tpu_custom_call.1} parent=1 // pred_check_branch
      %483 = sbr.rel (0) target = $region21
    $region20: #{tpu_custom_call.1} parent=1 // pred_region
      %484 = dma.done [#allocation4], 128
    $region21: #{tpu_custom_call.1} parent=1 // pred_fallthru
      _
    %485 = vsyncpa [#allocation3], 1
    %486 = vsyncpa [#allocation4], 1

</llo_original>
